<compile_context>
chip_gen: v7x
topology: tpu7x:2x2x1
jax: 0.10.0
libtpu: 0.0.40
codegen_flags: <defaults>
</compile_context>

<pallas_src>
import jax
import jax.numpy as jnp
from jax.experimental import pallas as pl
from jax.experimental.pallas import tpu as pltpu


def _relu_ln_convT_kernel(x_ref, w_ref, b_ref, g_ref, bt_ref, o_ref):
    # x_ref : (K, P)   bf16  im2col patches of one sample (P = Ho*Wo on the lane axis)
    # w_ref : (Cout, K) bf16  equivalent forward-conv weights
    # b_ref : (Cout, 1) f32   conv bias
    # g_ref : (Cout, 1) f32   LayerNorm gamma (per channel)
    # bt_ref: (Cout, 1) f32   LayerNorm beta  (per channel)
    # o_ref : (Cout, P) f32
    y = jnp.dot(w_ref[...], x_ref[...],
                preferred_element_type=jnp.float32)          # MXU, f32 accumulation
    y = y + b_ref[...]                                        # bias, broadcast over lanes

    # LayerNorm over the whole (C, H, W) of this sample (F.layer_norm, eps=1e-5,
    # biased variance), then per-channel affine.
    mean = jnp.mean(y)
    var = jnp.mean(jnp.square(y - mean))
    y = (y - mean) * jax.lax.rsqrt(var + 1e-5)
    y = y * g_ref[...] + bt_ref[...]

    o_ref[...] = jnp.maximum(y, 0.0).astype(o_ref.dtype)      # ReLU


def relu_ln_conv_transpose2d(x, weight, bias, gamma, beta, *,
                             stride, padding, output_padding):
    """x: (N, Cin, H, W); weight: (Cin, Cout, kh, kw)  [PyTorch ConvTranspose2d layout];
    bias/gamma/beta: (Cout,). Returns (N, Cout, Ho, Wo) float32."""
    N, Cin, H, W = x.shape
    _, Cout, kh, kw = weight.shape

    Ho = (H - 1) * stride - 2 * padding + kh + output_padding
    Wo = (W - 1) * stride - 2 * padding + kw + output_padding

    # --- glue (plain JAX): lower ConvTranspose2d to a stride-1 VALID forward conv ---
    # 1) dilate the input by `stride` (insert zeros)
    Hd = (H - 1) * stride + 1
    Wd = (W - 1) * stride + 1
    xd = jnp.zeros((N, Cin, Hd, Wd), x.dtype).at[:, :, ::stride, ::stride].set(x)
    # 2) zero-pad by (k-1-p) per side plus output_padding on bottom/right
    plo = kh - 1 - padding
    phi = kh - 1 - padding + output_padding
    xp = jnp.pad(xd, ((0, 0), (0, 0), (plo, phi), (plo, phi)))
    # 3) equivalent forward-conv weight: swap in/out channels and flip spatially
    w_eq = jnp.flip(weight, axis=(2, 3)).transpose(1, 0, 2, 3)        # (Cout, Cin, kh, kw)

    # im2col into (N, K, P): K flattened as (Cin, kh, kw) to match the weight flatten,
    # P = Ho*Wo kept as the minor (lane) axis -> lane-dense kernel output, no transpose.
    cols = []
    for i in range(kh):
        for j in range(kw):
            cols.append(xp[:, :, i:i + Ho, j:j + Wo])                 # (N, Cin, Ho, Wo)
    K = Cin * kh * kw
    P = Ho * Wo
    patches = jnp.stack(cols, axis=2).reshape(N, K, P)

    # bf16 feeds the MXU at native rate and halves im2col HBM traffic; accum stays f32.
    patches = patches.astype(jnp.bfloat16)
    w_mat = w_eq.reshape(Cout, K).astype(jnp.bfloat16)
    b_col = bias.reshape(Cout, 1).astype(jnp.float32)
    g_col = gamma.reshape(Cout, 1).astype(jnp.float32)
    bt_col = beta.reshape(Cout, 1).astype(jnp.float32)

    cost = pl.CostEstimate(
        flops=2 * N * P * K * Cout,
        transcendentals=N,  # one rsqrt per sample
        bytes_accessed=N * K * P * 2 + Cout * K * 2 + 3 * Cout * 4 + N * Cout * P * 4,
    )

    out = pl.pallas_call(
        _relu_ln_convT_kernel,
        out_shape=jax.ShapeDtypeStruct((N, Cout, P), jnp.float32),
        grid_spec=pltpu.PrefetchScalarGridSpec(
            num_scalar_prefetch=0,
            grid=(N,),
            in_specs=[
                pl.BlockSpec((pl.Squeezed(), K, P), lambda n: (n, 0, 0)),
                pl.BlockSpec((Cout, K), lambda n: (0, 0)),
                pl.BlockSpec((Cout, 1), lambda n: (0, 0)),
                pl.BlockSpec((Cout, 1), lambda n: (0, 0)),
                pl.BlockSpec((Cout, 1), lambda n: (0, 0)),
            ],
            out_specs=pl.BlockSpec((pl.Squeezed(), Cout, P), lambda n: (n, 0, 0)),
        ),
        compiler_params=pltpu.CompilerParams(dimension_semantics=("parallel",)),
        cost_estimate=cost,
    )(patches, w_mat, b_col, g_col, bt_col)

    # lane-dense layout: straight reshape back to NCHW, no transpose / extra HBM pass.
    return out.reshape(N, Cout, Ho, Wo)


def _reference(x, weight, bias, gamma, beta, *, stride, padding, output_padding, eps=1e-5):
    """Pure-JAX (f32) reference: ConvTranspose2d -> LayerNorm((C,H,W), per-channel affine) -> ReLU."""
    kh = weight.shape[2]
    w_eq = jnp.flip(weight, axis=(2, 3)).transpose(1, 0, 2, 3).astype(jnp.float32)
    pad = (kh - 1 - padding, kh - 1 - padding + output_padding)
    y = jax.lax.conv_general_dilated(
        x.astype(jnp.float32), w_eq,
        window_strides=(1, 1),
        padding=(pad, pad),
        lhs_dilation=(stride, stride),
        dimension_numbers=("NCHW", "OIHW", "NCHW"))
    y = y + bias.reshape(1, -1, 1, 1)
    mu = jnp.mean(y, axis=(1, 2, 3), keepdims=True)
    var = jnp.mean((y - mu) ** 2, axis=(1, 2, 3), keepdims=True)
    y = (y - mu) * jax.lax.rsqrt(var + eps)
    y = y * gamma.reshape(1, -1, 1, 1) + beta.reshape(1, -1, 1, 1)
    return jnp.maximum(y, 0.0)


if __name__ == "__main__":
    # Module config: ReLUINSConvTranspose2d(n_in=4, n_out=8, kernel_size=3, stride=2,
    #                                       padding=1, output_padding=1)
    N, Cin, H, W = 2, 4, 8, 8
    Cout, ksz, stride, padding, output_padding = 8, 3, 2, 1, 1

    key = jax.random.PRNGKey(0)
    kx, kw_, kb, kg, kbe = jax.random.split(key, 5)
    x = jax.random.normal(kx, (N, Cin, H, W), dtype=jnp.float32)
    # gaussian_weights_init: ConvTranspose weight ~ N(0, 0.02); PyTorch layout (Cin, Cout, kh, kw)
    weight = 0.02 * jax.random.normal(kw_, (Cin, Cout, ksz, ksz), dtype=jnp.float32)
    bias = 0.1 * jax.random.normal(kb, (Cout,), dtype=jnp.float32)
    # LayerNorm affine params (ones/zeros at init; perturbed here to exercise the affine path)
    gamma = 1.0 + 0.05 * jax.random.normal(kg, (Cout,), dtype=jnp.float32)
    beta = 0.05 * jax.random.normal(kbe, (Cout,), dtype=jnp.float32)

    out = relu_ln_conv_transpose2d(x, weight, bias, gamma, beta,
                                   stride=stride, padding=padding,
                                   output_padding=output_padding)
    out = jax.block_until_ready(out)

    ref = _reference(x, weight, bias, gamma, beta,
                     stride=stride, padding=padding, output_padding=output_padding)
    # tolerance accommodates the intentional bf16 cast of the MXU inputs (accumulation is f32)
    if not jnp.allclose(out, ref, atol=2e-2, rtol=2e-2):
        err = float(jnp.max(jnp.abs(out - ref)))
        raise AssertionError(f"Pallas kernel output does not match reference (max abs err {err})")

    print("KERNEL_OK")
</pallas_src>

<mosaic_0001>
module attributes {stable_mosaic.version = 11 : i64} {
  func.func @_relu_ln_convT_kernel(%arg0: i32, %arg1: memref<1x36x256xbf16, #tpu.memory_space<vmem>>, %arg2: memref<8x36xbf16, #tpu.memory_space<vmem>>, %arg3: memref<8x1xf32, #tpu.memory_space<vmem>>, %arg4: memref<8x1xf32, #tpu.memory_space<vmem>>, %arg5: memref<8x1xf32, #tpu.memory_space<vmem>>, %arg6: memref<1x8x256xf32, #tpu.memory_space<vmem>>) attributes {dimension_semantics = [#tpu.dimension_semantics<parallel>], iteration_bounds = array<i64: 2>, scalar_prefetch = 0 : i64, scratch_operands = 0 : i64, tpu.core_type = #tpu.core_type<tc>, window_params = [{transform_indices = @transform_0, window_bounds = array<i64: 1, 36, 256>}, {pipeline_mode = #tpu.pipeline_mode<synchronous>, transform_indices = @transform_1, window_bounds = array<i64: 8, 36>}, {pipeline_mode = #tpu.pipeline_mode<synchronous>, transform_indices = @transform_2, window_bounds = array<i64: 8, 1>}, {pipeline_mode = #tpu.pipeline_mode<synchronous>, transform_indices = @transform_3, window_bounds = array<i64: 8, 1>}, {pipeline_mode = #tpu.pipeline_mode<synchronous>, transform_indices = @transform_4, window_bounds = array<i64: 8, 1>}, {transform_indices = @transform_5, window_bounds = array<i64: 1, 8, 256>}]} {
    %c0 = arith.constant 0 : index
    %c0_0 = arith.constant 0 : index
    %0 = vector.load %arg2[%c0, %c0_0] : memref<8x36xbf16, #tpu.memory_space<vmem>>, vector<8x36xbf16>
    %c0_1 = arith.constant 0 : index
    %c0_2 = arith.constant 0 : index
    %c0_3 = arith.constant 0 : index
    %1 = vector.load %arg1[%c0_1, %c0_2, %c0_3] : memref<1x36x256xbf16, #tpu.memory_space<vmem>>, vector<1x36x256xbf16>
    %2 = vector.shape_cast %1 : vector<1x36x256xbf16> to vector<36x256xbf16>
    %cst = arith.constant dense<0.000000e+00> : vector<8x256xf32>
    %3 = tpu.matmul %0, %2, %cst {dimension_numbers = #tpu.dot_dimension_numbers<[1], [0], [0], [1], [0, 0, 1, 1], [], []>} : vector<8x36xbf16>, vector<36x256xbf16>, vector<8x256xf32> -> vector<8x256xf32>
    %c0_4 = arith.constant 0 : index
    %c0_5 = arith.constant 0 : index
    %4 = vector.load %arg3[%c0_4, %c0_5] : memref<8x1xf32, #tpu.memory_space<vmem>>, vector<8x1xf32>
    %5 = vector.broadcast %4 : vector<8x1xf32> to vector<8x256xf32>
    %6 = arith.addf %3, %5 : vector<8x256xf32>
    %7 = vector.shape_cast %6 : vector<8x256xf32> to vector<1x8x256xf32>
    %cst_6 = arith.constant dense<0.000000e+00> : vector<1xf32>
    %8 = vector.multi_reduction <add>, %7, %cst_6 [1, 2] : vector<1x8x256xf32> to vector<1xf32>
    %9 = vector.shape_cast %8 : vector<1xf32> to vector<1x1x1xf32>
    %10 = vector.extract %9[0, 0, 0] : f32 from vector<1x1x1xf32>
    %cst_7 = arith.constant 2.048000e+03 : f32
    %11 = arith.divf %10, %cst_7 : f32
    %12 = vector.broadcast %11 : f32 to vector<8x256xf32>
    %13 = arith.subf %6, %12 : vector<8x256xf32>
    %14 = arith.mulf %13, %13 : vector<8x256xf32>
    %15 = vector.shape_cast %14 : vector<8x256xf32> to vector<1x8x256xf32>
    %cst_8 = arith.constant dense<0.000000e+00> : vector<1xf32>
    %16 = vector.multi_reduction <add>, %15, %cst_8 [1, 2] : vector<1x8x256xf32> to vector<1xf32>
    %17 = vector.shape_cast %16 : vector<1xf32> to vector<1x1x1xf32>
    %18 = vector.extract %17[0, 0, 0] : f32 from vector<1x1x1xf32>
    %cst_9 = arith.constant 2.048000e+03 : f32
    %19 = arith.divf %18, %cst_9 : f32
    %20 = vector.broadcast %11 : f32 to vector<8x256xf32>
    %21 = arith.subf %6, %20 : vector<8x256xf32>
    %cst_10 = arith.constant 9.99999974E-6 : f32
    %22 = arith.addf %19, %cst_10 : f32
    %23 = math.rsqrt %22 : f32
    %24 = vector.broadcast %23 : f32 to vector<8x256xf32>
    %25 = arith.mulf %21, %24 : vector<8x256xf32>
    %c0_11 = arith.constant 0 : index
    %c0_12 = arith.constant 0 : index
    %26 = vector.load %arg4[%c0_11, %c0_12] : memref<8x1xf32, #tpu.memory_space<vmem>>, vector<8x1xf32>
    %27 = vector.broadcast %26 : vector<8x1xf32> to vector<8x256xf32>
    %28 = arith.mulf %25, %27 : vector<8x256xf32>
    %c0_13 = arith.constant 0 : index
    %c0_14 = arith.constant 0 : index
    %29 = vector.load %arg5[%c0_13, %c0_14] : memref<8x1xf32, #tpu.memory_space<vmem>>, vector<8x1xf32>
    %30 = vector.broadcast %29 : vector<8x1xf32> to vector<8x256xf32>
    %31 = arith.addf %28, %30 : vector<8x256xf32>
    %cst_15 = arith.constant 0.000000e+00 : f32
    %32 = vector.broadcast %cst_15 : f32 to vector<8x256xf32>
    %33 = arith.maximumf %31, %32 : vector<8x256xf32>
    %c0_16 = arith.constant 0 : index
    %c0_17 = arith.constant 0 : index
    %c0_18 = arith.constant 0 : index
    %34 = vector.load %arg6[%c0_16, %c0_17, %c0_18] : memref<1x8x256xf32, #tpu.memory_space<vmem>>, vector<1x8x256xf32>
    %35 = vector.shape_cast %34 : vector<1x8x256xf32> to vector<8x256xf32>
    %36 = vector.shape_cast %33 : vector<8x256xf32> to vector<1x8x256xf32>
    tpu.vector_store %arg6[%c0_16, %c0_17, %c0_18], %36 {strides = array<i32>} : memref<1x8x256xf32, #tpu.memory_space<vmem>>, vector<1x8x256xf32>,
    return
  }
  func.func @transform_0(%arg0: i32) -> (i32, i32, i32) {
    %c0_i32 = arith.constant 0 : i32
    %c0_i32_0 = arith.constant 0 : i32
    %c0_i32_1 = arith.constant 0 : i32
    return %arg0, %c0_i32, %c0_i32_0 : i32, i32, i32
  }
  func.func @transform_1(%arg0: i32) -> (i32, i32) {
    %c0_i32 = arith.constant 0 : i32
    %c0_i32_0 = arith.constant 0 : i32
    %c0_i32_1 = arith.constant 0 : i32
    return %c0_i32, %c0_i32_0 : i32, i32
  }
  func.func @transform_2(%arg0: i32) -> (i32, i32) {
    %c0_i32 = arith.constant 0 : i32
    %c0_i32_0 = arith.constant 0 : i32
    %c0_i32_1 = arith.constant 0 : i32
    return %c0_i32, %c0_i32_0 : i32, i32
  }
  func.func @transform_3(%arg0: i32) -> (i32, i32) {
    %c0_i32 = arith.constant 0 : i32
    %c0_i32_0 = arith.constant 0 : i32
    %c0_i32_1 = arith.constant 0 : i32
    return %c0_i32, %c0_i32_0 : i32, i32
  }
  func.func @transform_4(%arg0: i32) -> (i32, i32) {
    %c0_i32 = arith.constant 0 : i32
    %c0_i32_0 = arith.constant 0 : i32
    %c0_i32_1 = arith.constant 0 : i32
    return %c0_i32, %c0_i32_0 : i32, i32
  }
  func.func @transform_5(%arg0: i32) -> (i32, i32, i32) {
    %c0_i32 = arith.constant 0 : i32
    %c0_i32_0 = arith.constant 0 : i32
    %c0_i32_1 = arith.constant 0 : i32
    return %arg0, %c0_i32, %c0_i32_0 : i32, i32, i32
  }
}

</mosaic_0001>

<llo_original>
// kernel: tpu_custom_call.1
$region0: #{tpu_custom_call.1}
  #allocation0 [shape = 'u32[]', space=smem, size = 0x4, offset = 0x4, fixed_abs, tag = 'smem constant byte address 0x4 - core index']
  #allocation1 [shape = 'u32[144,128]{1,0:T(1,128)}', space=vmem, size = 0x12000, scoped, tag = 'internal scratch']
  %s0 = inlined_call_operand.vmem [shape: bf16[2,36,256], index: 0, kind: input, shape index: {}]
  %s1 = inlined_call_operand.vmem [shape: bf16[8,36], index: 1, kind: input, shape index: {}]
  %s2 = inlined_call_operand.vmem [shape: f32[8,1], index: 2, kind: input, shape index: {}]
  %s3 = inlined_call_operand.vmem [shape: f32[8,1], index: 3, kind: input, shape index: {}]
  %s4 = inlined_call_operand.vmem [shape: f32[8,1], index: 4, kind: input, shape index: {}]
  %s5 = inlined_call_operand.hbm [shape: f32[2,8,256], index: 5, kind: output, shape index: {}]
  %s6 = sld [smem:[#allocation0]]
  $region53: #{tpu_custom_call.1} parent=0
    _
  %s8 = ssub.s32 1, %s6
  %s9 = scalar_select 0, %s8, %s6
  $region1: #{tpu_custom_call.1} parent=0
    #allocation2 [shape = 'u8[16384]{0}', space=vmem, size = 0x4000, scoped, tag = 'output window, operand 0']
    #allocation3 [shape = 's32[2]{0}', space=sflag, size = 0x8, scoped, tag = 'scoped memory for tpu_custom_call.1']
    %10 = vsyncpa [#allocation3], 0
    %s11 = scalar_lea.sflag [#allocation3], 1
    %12 = vsyncpa %s11, 0
    loop: start=0, step=1, limit=4
    $region2: #{tpu_custom_call.1} parent=1 // loop_pre_header
      _
    $region3: #{tpu_custom_call.1} parent=1 // loop_header
      %s14 = sphi 0, %s18
      %p15 = scmp.ge.s32.totalorder %s14, 4
      %s24 = sphi 0, %s26
      %s27 = sphi 0, %s24
      %s28 = sphi 0, %s27
      %s44 = sphi 0, %s28
      %s48 = sphi 0, %s48
      %s50 = sphi 0, %s48
      %s51 = sphi 0, %s50
      %s65 = sphi 0, %s51
      %s69 = sphi 0, %s69
      %s71 = sphi 0, %s69
      %s72 = sphi 0, %s71
      %s86 = sphi 0, %s72
      %s90 = sphi 0, %s90
      %s92 = sphi 0, %s90
      %s93 = sphi 0, %s92
      %s107 = sphi 0, %s93
      %s111 = sphi 0, %s111
      %s113 = sphi 0, %s111
      %s114 = sphi 0, %s113
      %s128 = sphi 0, %s114
      %s134 = sphi 0, %s136
      %s137 = sphi 0, %s134
      %s138 = sphi 0, %s137
      %s154 = sphi 0, %s138
    $region4: #{tpu_custom_call.1} parent=1 // loop_header_branch
      %17 = sbr.rel (%p15) target = $region8
    $region5: #{tpu_custom_call.1} parent=1 // loop_body
      %s19 = ssub.s32 %s14, 1
      %s20 = ssub.s32 %s14, 2
      %s21 = sadd.s32 %s14, 1
      %s22 = ssub.s32 %s14, %s21
      %p23 = scmp.eq.s32.totalorder %s22, 0
      %s25 = sadd.s32 %s24, 1
      %s26 = scalar_select %p23, %s24, %s25
      %p29 = pneg %p23
      %p30 = scmp.eq.s32.totalorder %s14, 1
      %p31 = por %p29, %p30
      %p32 = scmp.ne.s32.totalorder %s24, %s27
      %p33 = scmp.eq.s32.totalorder %s14, 0
      %p34 = por %p32, %p33
      %p35 = scmp.ne.s32.totalorder %s24, %s27
      %p36 = scmp.eq.s32.totalorder %s19, 1
      %p37 = por %p35, %p36
      %p38 = scmp.ne.s32.totalorder %s27, %s28
      %p39 = scmp.eq.s32.totalorder %s19, 0
      %p40 = por %p38, %p39
      %p41 = scmp.ne.s32.totalorder %s27, %s28
      %p42 = scmp.eq.s32.totalorder %s20, 1
      %p43 = por %p41, %p42
      %p45 = scmp.ne.s32.totalorder %s28, %s44
      %p46 = scmp.eq.s32.totalorder %s20, 0
      %p47 = por %p45, %p46
      %s49 = sadd.s32 %s48, 1
      %p52 = scmp.eq.s32.totalorder %s14, 1
      %p53 = scmp.ne.s32.totalorder %s48, %s50
      %p54 = scmp.eq.s32.totalorder %s14, 0
      %p55 = por %p53, %p54
      %p56 = scmp.ne.s32.totalorder %s48, %s50
      %p57 = scmp.eq.s32.totalorder %s19, 1
      %p58 = por %p56, %p57
      %p59 = scmp.ne.s32.totalorder %s50, %s51
      %p60 = scmp.eq.s32.totalorder %s19, 0
      %p61 = por %p59, %p60
      %p62 = scmp.ne.s32.totalorder %s50, %s51
      %p63 = scmp.eq.s32.totalorder %s20, 1
      %p64 = por %p62, %p63
      %p66 = scmp.ne.s32.totalorder %s51, %s65
      %p67 = scmp.eq.s32.totalorder %s20, 0
      %p68 = por %p66, %p67
      %s70 = sadd.s32 %s69, 1
      %p73 = scmp.eq.s32.totalorder %s14, 1
      %p74 = scmp.ne.s32.totalorder %s69, %s71
      %p75 = scmp.eq.s32.totalorder %s14, 0
      %p76 = por %p74, %p75
      %p77 = scmp.ne.s32.totalorder %s69, %s71
      %p78 = scmp.eq.s32.totalorder %s19, 1
      %p79 = por %p77, %p78
      %p80 = scmp.ne.s32.totalorder %s71, %s72
      %p81 = scmp.eq.s32.totalorder %s19, 0
      %p82 = por %p80, %p81
      %p83 = scmp.ne.s32.totalorder %s71, %s72
      %p84 = scmp.eq.s32.totalorder %s20, 1
      %p85 = por %p83, %p84
      %p87 = scmp.ne.s32.totalorder %s72, %s86
      %p88 = scmp.eq.s32.totalorder %s20, 0
      %p89 = por %p87, %p88
      %s91 = sadd.s32 %s90, 1
      %p94 = scmp.eq.s32.totalorder %s14, 1
      %p95 = scmp.ne.s32.totalorder %s90, %s92
      %p96 = scmp.eq.s32.totalorder %s14, 0
      %p97 = por %p95, %p96
      %p98 = scmp.ne.s32.totalorder %s90, %s92
      %p99 = scmp.eq.s32.totalorder %s19, 1
      %p100 = por %p98, %p99
      %p101 = scmp.ne.s32.totalorder %s92, %s93
      %p102 = scmp.eq.s32.totalorder %s19, 0
      %p103 = por %p101, %p102
      %p104 = scmp.ne.s32.totalorder %s92, %s93
      %p105 = scmp.eq.s32.totalorder %s20, 1
      %p106 = por %p104, %p105
      %p108 = scmp.ne.s32.totalorder %s93, %s107
      %p109 = scmp.eq.s32.totalorder %s20, 0
      %p110 = por %p108, %p109
      %s112 = sadd.s32 %s111, 1
      %p115 = scmp.eq.s32.totalorder %s14, 1
      %p116 = scmp.ne.s32.totalorder %s111, %s113
      %p117 = scmp.eq.s32.totalorder %s14, 0
      %p118 = por %p116, %p117
      %p119 = scmp.ne.s32.totalorder %s111, %s113
      %p120 = scmp.eq.s32.totalorder %s19, 1
      %p121 = por %p119, %p120
      %p122 = scmp.ne.s32.totalorder %s113, %s114
      %p123 = scmp.eq.s32.totalorder %s19, 0
      %p124 = por %p122, %p123
      %p125 = scmp.ne.s32.totalorder %s113, %s114
      %p126 = scmp.eq.s32.totalorder %s20, 1
      %p127 = por %p125, %p126
      %p129 = scmp.ne.s32.totalorder %s114, %s128
      %p130 = scmp.eq.s32.totalorder %s20, 0
      %p131 = por %p129, %p130
      %s132 = ssub.s32 %s14, %s21
      %p133 = scmp.eq.s32.totalorder %s132, 0
      %s135 = sadd.s32 %s134, 1
      %s136 = scalar_select %p133, %s134, %s135
      %p139 = pneg %p133
      %p140 = scmp.eq.s32.totalorder %s14, 1
      %p141 = por %p139, %p140
      %p142 = scmp.ne.s32.totalorder %s134, %s137
      %p143 = scmp.eq.s32.totalorder %s14, 0
      %p144 = por %p142, %p143
      %p145 = scmp.ne.s32.totalorder %s134, %s137
      %p146 = scmp.eq.s32.totalorder %s19, 1
      %p147 = por %p145, %p146
      %p148 = scmp.ne.s32.totalorder %s137, %s138
      %p149 = scmp.eq.s32.totalorder %s19, 0
      %p150 = por %p148, %p149
      %p151 = scmp.ne.s32.totalorder %s137, %s138
      %p152 = scmp.eq.s32.totalorder %s20, 1
      %p153 = por %p151, %p152
      %p155 = scmp.ne.s32.totalorder %s138, %s154
      %p156 = scmp.eq.s32.totalorder %s20, 0
      %p157 = por %p155, %p156
      %p158 = scmp.le.s32.totalorder 1, %s14
      %p159 = scmp.lt.s32.totalorder %s14, 3
      %p160 = pnand %p158, %p159
      %p161 = pneg %p160
      // Predicated region
      $region9: #{tpu_custom_call.1} parent=5 // pred_check
        _
      $region10: #{tpu_custom_call.1} parent=5 // pred_check_branch
        %163 = sbr.rel (%p160) target = $region12
      $region11: #{tpu_custom_call.1} parent=5 // pred_region
        %s164 = ssub.s32 %s14, 1
        // Predicated region
        $region13: #{tpu_custom_call.1} parent=11 // pred_check
          %p165 = pneg %p61
        $region14: #{tpu_custom_call.1} parent=11 // pred_check_branch
          %167 = sbr.rel (%p165) target = $region16
        $region15: #{tpu_custom_call.1} parent=11 // pred_region
          _
        $region16: #{tpu_custom_call.1} parent=11 // pred_fallthru
          _
        // Predicated region
        $region17: #{tpu_custom_call.1} parent=11 // pred_check
          %p168 = pneg %p82
        $region18: #{tpu_custom_call.1} parent=11 // pred_check_branch
          %170 = sbr.rel (%p168) target = $region20
        $region19: #{tpu_custom_call.1} parent=11 // pred_region
          _
        $region20: #{tpu_custom_call.1} parent=11 // pred_fallthru
          _
        // Predicated region
        $region21: #{tpu_custom_call.1} parent=11 // pred_check
          %p171 = pneg %p103
        $region22: #{tpu_custom_call.1} parent=11 // pred_check_branch
          %173 = sbr.rel (%p171) target = $region24
        $region23: #{tpu_custom_call.1} parent=11 // pred_region
          _
        $region24: #{tpu_custom_call.1} parent=11 // pred_fallthru
          _
        // Predicated region
        $region25: #{tpu_custom_call.1} parent=11 // pred_check
          %p174 = pneg %p124
        $region26: #{tpu_custom_call.1} parent=11 // pred_check_branch
          %176 = sbr.rel (%p174) target = $region28
        $region27: #{tpu_custom_call.1} parent=11 // pred_region
          _
        $region28: #{tpu_custom_call.1} parent=11 // pred_fallthru
          _
      $region12: #{tpu_custom_call.1} parent=5 // pred_fallthru
        _
      %p177 = scmp.lt.s32.totalorder %s14, 2
      // Predicated region
      $region29: #{tpu_custom_call.1} parent=5 // pred_check
        %p178 = pneg %p177
      $region30: #{tpu_custom_call.1} parent=5 // pred_check_branch
        %180 = sbr.rel (%p178) target = $region32
      $region31: #{tpu_custom_call.1} parent=5 // pred_region
        // Predicated region
        $region33: #{tpu_custom_call.1} parent=31 // pred_check
          %p181 = pneg %p34
        $region34: #{tpu_custom_call.1} parent=31 // pred_check_branch
          %183 = sbr.rel (%p181) target = $region36
        $region35: #{tpu_custom_call.1} parent=31 // pred_region
          %p184 = scmp.lt.s32.totalorder %s14, 1
          %s185 = scalar_select %p184, %s14, 1
          %s186 = smul.addr %s185, 10
          %s187 = smul.addr %s186, 4
          %s188 = scalar_lea.vmem %s0, %s187
        $region36: #{tpu_custom_call.1} parent=31 // pred_fallthru
          _
      $region32: #{tpu_custom_call.1} parent=5 // pred_fallthru
        _
      %p189 = scmp.le.s32.totalorder 1, %s14
      %p190 = scmp.lt.s32.totalorder %s14, 3
      %p191 = pnand %p189, %p190
      %p192 = pneg %p191
      // Predicated region
      $region37: #{tpu_custom_call.1} parent=5 // pred_check
        _
      $region38: #{tpu_custom_call.1} parent=5 // pred_check_branch
        %194 = sbr.rel (%p191) target = $region40
      $region39: #{tpu_custom_call.1} parent=5 // pred_region
        %s195 = ssub.s32 %s14, 1
        %p196 = scmp.lt.s32.totalorder %s19, 1
        %s197 = scalar_select %p196, %s19, 1
        %s198 = smul.addr %s197, 10
        %s199 = smul.addr %s198, 4
        %s200 = scalar_lea.vmem %s0, %s199
        %p201 = pneg %p40
        %p202 = pneg %p37
        %p203 = pneg %p61
        %p204 = pneg %p58
        %p205 = pneg %p82
        %p206 = pneg %p79
        %p207 = pneg %p103
        %p208 = pneg %p100
        %p209 = pneg %p124
        %p210 = pneg %p121
        %p211 = pneg %p150
        %p212 = pneg %p147
        %s213 = sand.u32 %s137, 1
        %s214 = scalar_lea.sflag [#allocation3], %s213
        %s215 = sand.u32 %s137, 1
        %s216 = smul.addr %s215, 16
        %s217 = scalar_lea.vmem [#allocation2], %s216
        %p218 = scmp.lt.s32.totalorder %s19, 1
        %s219 = scalar_select %p218, %s19, 1
        %s220 = smul.addr %s219, 10
        %s221 = smul.addr %s220, 4
        %s222 = scalar_lea.vmem %s0, %s221
        %v224 = vld [vmem:[%s1] sm:$0xf]
        %v225 = vld [vmem:[%s222] sm:$0xff]
        %v226 = vld [vmem:[%s222 + $0x8] sm:$0xff]
        %v227 = vld [vmem:[%s222 + $0x10] sm:$0xff]
        %v228 = vld [vmem:[%s222 + $0x18] sm:$0xff]
        %v229 = vld [vmem:[%s222 + $0x20] sm:$0x33]
        %v230 = vld [vmem:[%s2] sm:$0xff]
        %232 = vset.pattern.permute.xlu0 0
        %233 = vperm.xlu0 %232, %v230
        %v234 = vpop.permute.xlu0 %233
        %v241 = vunpack.c.l.b16 %v225
        %v242 = vunpack.c.h.b16 %v225
        %v243 = vunpack.c.l.b16 %v226
        %v244 = vunpack.c.h.b16 %v226
        %v245 = vunpack.c.l.b16 %v227
        %v246 = vunpack.c.h.b16 %v227
        %v247 = vunpack.c.l.b16 %v228
        %v248 = vunpack.c.h.b16 %v228
        %v249 = vunpack.c.l.b16 %v229
        %v250 = vunpack.c.h.b16 %v229
        %v251 = vpack.c.b16 %v243, %v241
        %v252 = vpack.c.b16 %v244, %v242
        %v253 = vpack.c.b16 %v247, %v245
        %v254 = vpack.c.b16 %v248, %v246
        %v255 = vpack.c.b16 %v249, %v249
        %v256 = vpack.c.b16 %v250, %v250
        %vm261 = vcmask 293888
        %v263 = vsel %vm261, %v224, 0
        %vm265 = vcmask 1041408
        %v267 = vsel %vm265, %v255, 0
        %v270 = vsel %vm265, %v256, 0
        %272 = vmatprep.subr.bf16.mxu0 %v252
        %273 = vmatpush1.bf16.msra.mxu0 %v251
        %274 = vmatprep.subr.bf16.mxu0 %v254
        %275 = vmatpush1.bf16.msra.mxu0 %v253
        %276 = vmatprep.subr.bf16.mxu0 %v270
        %277 = vmatpush1.bf16.msra.mxu0 %v267
        %278 = vmatprep.subr.bf16.mxu0 0
        %279 = vmatpush1.bf16.msra.mxu0 0
        %280 = vmatprep.subr.bf16.mxu0 0
        %281 = vmatpush1.bf16.msra.mxu0 0
        %282 = vmatprep.subr.bf16.mxu0 0
        %283 = vmatpush1.bf16.msra.mxu0 0
        %284 = vmatprep.subr.bf16.mxu0 0
        %285 = vmatpush1.bf16.msra.mxu0 0
        %286 = vmatprep.subr.bf16.mxu0 0
        %287 = vmatpush1.bf16.msra.mxu0 0
        %288 = vmatprep.subr.bf16.mxu0 0
        %289 = vmatpush1.bf16.msra.mxu0 0
        %290 = vmatprep.subr.bf16.mxu0 0
        %291 = vmatpush1.bf16.msra.mxu0 0
        %292 = vmatprep.subr.bf16.mxu0 0
        %293 = vmatpush1.bf16.msra.mxu0 0
        %294 = vmatprep.subr.bf16.mxu0 0
        %295 = vmatpush1.bf16.msra.mxu0 0
        %296 = vmatprep.subr.bf16.mxu0 0
        %297 = vmatpush1.bf16.msra.mxu0 0
        %298 = vmatprep.subr.bf16.mxu0 0
        %299 = vmatpush1.bf16.msra.mxu0 0
        %300 = vmatprep.subr.bf16.mxu0 0
        %301 = vmatpush1.bf16.msra.mxu0 0
        %302 = vmatprep.subr.bf16.mxu0 0
        %303 = vmatpush1.bf16.msra.mxu0 0
        %304 = vmatprep.mubr.bf16.mxu0 0
        %305 = vmatmul.mubr.bf16.gmra.mrb[0].mxu0 %v263
        %v306 = vpop.f32.mrb[0].mxu0
        %v307 = vadd.f32 %v234, %v306
        %v308 = vpop.f32.mrb[0].mxu0
        %v309 = vadd.f32 %v234, %v308
        %v310 = vpop.f32.mrb[0].mxu0
        %v311 = vpop.f32.mrb[0].mxu0
        %312 = vdwg.mxu0
        %v313 = vadd.f32 %v307, %v309
        %314 = vadd.xlane.f32.xlu0 %v313
        %v315 = vpop.xlane.xlu0 %314
        %v316 = vrot.slane %v315, 4
        %v317 = vadd.f32 %v315, %v316
        %v318 = vrot.slane %v317, 2
        %v319 = vadd.f32 %v317, %v318
        %v320 = vrot.slane %v319, 1
        %v321 = vadd.f32 %v319, %v320
        %s322 = vtos %v321
        %v323 = vrcp.pop 2048.0
        %s324 = vtos %v323
        %s325 = smul.f32 %s322, %s324
        %v326 = vstv %s325
        %v327 = vsub.f32 %v307, %v326
        %v328 = vsub.f32 %v309, %v326
        %v329 = vmul.f32 %v327, %v327
        %v330 = vmul.f32 %v328, %v328
        %v331 = vadd.f32 %v329, %v330
        %332 = vadd.xlane.f32.xlu0 %v331
        %v333 = vpop.xlane.xlu0 %332
        %v334 = vrot.slane %v333, 4
        %v335 = vadd.f32 %v333, %v334
        %v336 = vrot.slane %v335, 2
        %v337 = vadd.f32 %v335, %v336
        %v338 = vrot.slane %v337, 1
        %v339 = vadd.f32 %v337, %v338
        %s340 = vtos %v339
        %v341 = vrcp.pop 2048.0
        %s342 = vtos %v341
        %s343 = smul.f32 %s340, %s342
        %s344 = sadd.f32 %s343, 1e-05
        %v345 = vstv %s344
        %v346 = vrsqrt.pop %v345
        %s347 = vtos %v346
        %v348 = vstv %s347
        %v349 = vmul.f32 %v327, %v348
        %v350 = vmul.f32 %v328, %v348
        %v351 = vld [vmem:[%s3] sm:$0xff]
        %353 = vset.pattern.permute.xlu0 0
        %354 = vperm.xlu0 %353, %v351
        %v355 = vpop.permute.xlu0 %354
        %v357 = vmul.f32 %v349, %v355
        %v358 = vmul.f32 %v350, %v355
        %v359 = vld [vmem:[%s4] sm:$0xff]
        %361 = vset.pattern.permute.xlu0 0
        %362 = vperm.xlu0 %361, %v359
        %v363 = vpop.permute.xlu0 %362
        %v365 = vadd.f32 %v357, %v363
        %v366 = vadd.f32 %v358, %v363
        %v367 = vmax.f32 %v365, 0.0
        %v368 = vmax.f32 %v366, 0.0
        %369 = vst [vmem:[%s217] sm:$0xff] %v367
        %370 = vst [vmem:[%s217 + $0x8] sm:$0xff] %v368
        %s371 = sand.u32 %s137, 1
        %s372 = scalar_lea.sflag [#allocation3], %s371
        %s373 = sand.u32 %s137, 1
        %s374 = smul.addr %s373, 16
        %s375 = scalar_lea.vmem [#allocation2], %s374
        // Predicated region
        $region41: #{tpu_custom_call.1} parent=39 // pred_check
          %p376 = pneg %p147
        $region42: #{tpu_custom_call.1} parent=39 // pred_check_branch
          %378 = sbr.rel (%p376) target = $region44
        $region43: #{tpu_custom_call.1} parent=39 // pred_region
          %s380 = ssub.s32 256, 256
          %381 = vsyncadd %s372, %s380
          %s382 = smul.addr %s19, 2
          %s383 = smul.addr %s382, 128
          %s384 = scalar_lea.hbm %s5, %s383
          %s386 = sshll.u32 %s375, 4
          %s387 = int_to_ptr.vmem [resolvable:$true] %s386
          %389 = dma.vmem_to_hbm [thread:$0]  %s387, 256, %s384, %s372
        $region44: #{tpu_custom_call.1} parent=39 // pred_fallthru
          _
      $region40: #{tpu_custom_call.1} parent=5 // pred_fallthru
        _
      %p390 = scmp.le.s32.totalorder 2, %s14
      // Predicated region
      $region45: #{tpu_custom_call.1} parent=5 // pred_check
        %p391 = pneg %p390
      $region46: #{tpu_custom_call.1} parent=5 // pred_check_branch
        %393 = sbr.rel (%p391) target = $region48
      $region47: #{tpu_custom_call.1} parent=5 // pred_region
        %s394 = ssub.s32 %s14, 2
        // Predicated region
        $region49: #{tpu_custom_call.1} parent=47 // pred_check
          %p395 = pneg %p153
        $region50: #{tpu_custom_call.1} parent=47 // pred_check_branch
          %397 = sbr.rel (%p395) target = $region52
        $region51: #{tpu_custom_call.1} parent=47 // pred_region
          %s398 = sand.u32 %s138, 1
          %s399 = scalar_lea.sflag [#allocation3], %s398
          %s400 = sand.u32 %s138, 1
          %s401 = smul.addr %s400, 16
          %s402 = scalar_lea.vmem [#allocation2], %s401
          %403 = dma.done %s399, 256
        $region52: #{tpu_custom_call.1} parent=47 // pred_fallthru
          _
      $region48: #{tpu_custom_call.1} parent=5 // pred_fallthru
        _
    $region6: #{tpu_custom_call.1} parent=1 // loop_footer
      %s18 = sadd.s32 1, %s14
    $region7: #{tpu_custom_call.1} parent=1 // loop_footer_branch
      %13 = sbr.rel target = $region3
    $region8: #{tpu_custom_call.1} parent=1 // loop_exit
      _
    %404 = vsyncpa [#allocation3], 1
    %s405 = scalar_lea.sflag [#allocation3], 1
    %406 = vsyncpa %s405, 1

</llo_original>
